<compile_context>
chip_gen: v7x
topology: tpu7x:2x2x1
jax: 0.10.0
libtpu: 0.0.40
codegen_flags: <defaults>
</compile_context>

<pallas_src>
import functools

import jax
import jax.numpy as jnp
from jax.experimental import pallas as pl
from jax.experimental.pallas import tpu as pltpu

LANES = 128


def _clamp_kernel(x_ref, o_ref, *, min_val, max_val):
    # Pure VPU elementwise work on the current VMEM tile.
    x = x_ref[...]
    lo = jnp.asarray(min_val, x.dtype)  # clamp in the input dtype (torch.clamp semantics)
    hi = jnp.asarray(max_val, x.dtype)
    o_ref[...] = jnp.minimum(jnp.maximum(x, lo), hi)


def _clamp_jnp(x, min_val, max_val):
    # Same semantics as the kernel body; used for tiny inputs and ragged tails.
    lo = jnp.asarray(min_val, x.dtype)
    hi = jnp.asarray(max_val, x.dtype)
    return jnp.minimum(jnp.maximum(x, lo), hi)


def _round_up(a, b):
    return ((a + b - 1) // b) * b


@functools.lru_cache(maxsize=1)
def _is_v7x():
    """Best-effort detection of a 2-TensorCore (v7x) part; safe fallback = False."""
    try:
        kind = str(getattr(jax.devices()[0], "device_kind", "")).lower()
    except Exception:
        kind = ""
    return ("v7" in kind) or ("7x" in kind)


def _run_clamp_2d(x2d, min_val, max_val):
    """Run the Pallas clamp kernel on a lane-dense (rows, 128) array."""
    rows = x2d.shape[0]
    dtype = x2d.dtype
    itemsize = jnp.dtype(dtype).itemsize
    v7x = _is_v7x()

    # Packed sub-32-bit dtypes need a larger second-minor tile (sublane packing).
    min_rows = {4: 8, 2: 16, 1: 32}.get(itemsize, 8)

    # Per-generation budgets.
    #  - non-v7x: 4 MiB blocks (~85% of HBM roofline measured on v6e), 32 MiB VMEM limit.
    #  - v7x: larger blocks to amortize per-step overhead against 3.2 TB/s HBM,
    #    but stay well under the 64 MiB physical VMEM with double-buffered in+out.
    max_block_bytes = (8 if v7x else 4) * 1024 * 1024
    vmem_limit = (48 if v7x else 32) * 1024 * 1024
    # v7x: >= 8 steps so both TensorCores get work via dimension_semantics.
    # single-TC chips: only >= 2 steps so prefetch / writeback DMAs can overlap.
    min_steps = 8 if v7x else 2

    tr_cap = max(min_rows, (max_block_bytes // (LANES * itemsize) // min_rows) * min_rows)
    tr_for_steps = max(min_rows, _round_up(pl.cdiv(rows, min_steps), min_rows))
    tr = min(tr_cap, tr_for_steps)

    if rows <= tr:
        # Single block spanning the whole array: block shape == full array dims
        # is always a legal tiling (covers rows not being a multiple of 8).
        tr = rows
        steps = 1
    else:
        steps = pl.cdiv(rows, tr)
        if v7x and steps > 1 and (steps % 2):
            # Balance the two TensorCores: prefer an even step count.
            tr = max(min_rows, _round_up(pl.cdiv(rows, steps + 1), min_rows))
            steps = pl.cdiv(rows, tr)

    kernel = functools.partial(_clamp_kernel, min_val=min_val, max_val=max_val)
    cost = pl.CostEstimate(
        flops=2 * rows * LANES,                       # one min + one max per element
        transcendentals=0,
        bytes_accessed=2 * rows * LANES * itemsize,   # read n + write n
    )

    return pl.pallas_call(
        kernel,
        out_shape=jax.ShapeDtypeStruct((rows, LANES), dtype),
        grid=(steps,),
        in_specs=[pl.BlockSpec((tr, LANES), lambda i: (i, 0))],
        out_specs=pl.BlockSpec((tr, LANES), lambda i: (i, 0)),
        compiler_params=pltpu.CompilerParams(
            dimension_semantics=("parallel",),
            vmem_limit_bytes=vmem_limit,
        ),
        cost_estimate=cost,
    )(x2d)


def clamp_pallas(x, min_val=-1.0, max_val=1.0, *, min_pallas_bytes=256 * 1024):
    """Elementwise clamp(x, min, max) matching torch.clamp(x, min=min_val, max=max_val).

    Note: bounds are applied in the input dtype (mirrors torch.clamp applied in
    the tensor's dtype); for integer / low-precision dtypes non-representable
    bounds are rounded accordingly.
    """
    orig_shape = x.shape
    dtype = x.dtype
    n = x.size
    if n == 0:                      # zero-sized input: nothing to do
        return x

    itemsize = jnp.dtype(dtype).itemsize
    if n * itemsize < min_pallas_bytes:
        # Tiny tensor: custom-call launch + DMA setup would dominate; stay fusable.
        return _clamp_jnp(x, min_val, max_val)

    tail_n = n % LANES
    if tail_n == 0:
        # Fast path: free reshape to the lane-dense 2-D view, no copies.
        out2d = _run_clamp_2d(x.reshape(-1, LANES), min_val, max_val)
        return out2d.reshape(orig_shape)

    # Ragged numel: kernel on the 128-aligned prefix, jnp on the <128-elem tail.
    x_flat = x.reshape(-1)
    n_aligned = n - tail_n
    if n_aligned == 0:
        return _clamp_jnp(x, min_val, max_val)
    head = _run_clamp_2d(x_flat[:n_aligned].reshape(-1, LANES), min_val, max_val)
    tail = _clamp_jnp(x_flat[n_aligned:], min_val, max_val)
    return jnp.concatenate([head.reshape(-1), tail]).reshape(orig_shape)


if __name__ == "__main__":
    key = jax.random.PRNGKey(0)

    # NCHW feature map consistent with the module: batch=2, channels=4, 16x16.
    # (min_pallas_bytes=0 forces the Pallas path even for this small demo tensor.)
    x = jax.random.normal(key, (2, 4, 16, 16), dtype=jnp.float32) * 3.0
    y = jax.block_until_ready(clamp_pallas(x, min_val=-1.0, max_val=1.0, min_pallas_bytes=0))
    assert y.shape == x.shape and y.dtype == x.dtype
    assert jnp.allclose(y, jnp.clip(x, -1.0, 1.0)), "mismatch vs reference clamp (fast path)"

    # Ragged-numel input exercises the aligned-prefix kernel + tail path (no pad/slice copy).
    x2 = jax.random.normal(jax.random.PRNGKey(1), (5, 7, 9), dtype=jnp.float32) * 3.0
    y2 = jax.block_until_ready(clamp_pallas(x2, min_val=-1.0, max_val=1.0, min_pallas_bytes=0))
    assert y2.shape == x2.shape and y2.dtype == x2.dtype
    assert jnp.allclose(y2, jnp.clip(x2, -1.0, 1.0)), "mismatch vs reference clamp (ragged path)"

    # Larger bf16 input goes through the default heuristic (multi-step grid, packed dtype).
    x3 = jax.random.normal(jax.random.PRNGKey(2), (4, 32, 64, 32), dtype=jnp.bfloat16) * 3.0
    y3 = jax.block_until_ready(clamp_pallas(x3, min_val=-1.0, max_val=1.0))
    assert y3.shape == x3.shape and y3.dtype == x3.dtype
    assert jnp.allclose(y3.astype(jnp.float32),
                        jnp.clip(x3, -1.0, 1.0).astype(jnp.float32)), "mismatch (bf16 path)"

    print("KERNEL_OK")
</pallas_src>

<mosaic_0001>
module attributes {stable_mosaic.version = 11 : i64} {
  func.func @_clamp_kernel(%arg0: i32, %arg1: memref<8x128xf32, #tpu.memory_space<vmem>>, %arg2: memref<8x128xf32, #tpu.memory_space<vmem>>) attributes {dimension_semantics = [#tpu.dimension_semantics<parallel>], iteration_bounds = array<i64: 2>, scalar_prefetch = 0 : i64, scratch_operands = 0 : i64, tpu.core_type = #tpu.core_type<tc>, window_params = [{transform_indices = @transform_0, window_bounds = array<i64: 8, 128>}, {transform_indices = @transform_1, window_bounds = array<i64: 8, 128>}]} {
    %c0 = arith.constant 0 : index
    %c0_0 = arith.constant 0 : index
    %0 = vector.load %arg1[%c0, %c0_0] : memref<8x128xf32, #tpu.memory_space<vmem>>, vector<8x128xf32>
    %cst = arith.constant -1.000000e+00 : f32
    %1 = vector.broadcast %cst : f32 to vector<8x128xf32>
    %2 = arith.maximumf %0, %1 : vector<8x128xf32>
    %cst_1 = arith.constant 1.000000e+00 : f32
    %3 = vector.broadcast %cst_1 : f32 to vector<8x128xf32>
    %4 = arith.minimumf %2, %3 : vector<8x128xf32>
    %c0_2 = arith.constant 0 : index
    %c0_3 = arith.constant 0 : index
    %5 = vector.load %arg2[%c0_2, %c0_3] : memref<8x128xf32, #tpu.memory_space<vmem>>, vector<8x128xf32>
    tpu.vector_store %arg2[%c0_2, %c0_3], %4 {strides = array<i32>} : memref<8x128xf32, #tpu.memory_space<vmem>>, vector<8x128xf32>,
    return
  }
  func.func @transform_0(%arg0: i32) -> (i32, i32) {
    %c0_i32 = arith.constant 0 : i32
    %c0_i32_0 = arith.constant 0 : i32
    return %arg0, %c0_i32 : i32, i32
  }
  func.func @transform_1(%arg0: i32) -> (i32, i32) {
    %c0_i32 = arith.constant 0 : i32
    %c0_i32_0 = arith.constant 0 : i32
    return %arg0, %c0_i32 : i32, i32
  }
}

</mosaic_0001>

<llo_original>
// kernel: tpu_custom_call.1
$region0: #{tpu_custom_call.1}
  #allocation0 [shape = 'u32[]', space=smem, size = 0x4, offset = 0x4, fixed_abs, tag = 'smem constant byte address 0x4 - core index']
  #allocation1 [shape = 'u32[144,128]{1,0:T(1,128)}', space=vmem, size = 0x12000, scoped, tag = 'internal scratch']
  %s0 = inlined_call_operand.hbm [shape: f32[16,128], index: 0, kind: input, shape index: {}]
  %s1 = inlined_call_operand.hbm [shape: f32[16,128], index: 1, kind: output, shape index: {}]
  %s2 = sld [smem:[#allocation0]]
  $region41: #{tpu_custom_call.1} parent=0
    _
  %s4 = ssub.s32 1, %s2
  %s5 = scalar_select 0, %s4, %s2
  $region1: #{tpu_custom_call.1} parent=0
    #allocation2 [shape = 'u8[8192]{0}', space=vmem, size = 0x2000, scoped, tag = 'input window, operand 0']
    #allocation3 [shape = 's32[2]{0}', space=sflag, size = 0x8, scoped, tag = 'scoped memory for tpu_custom_call.1']
    #allocation4 [shape = 's32[2]{0}', space=sflag, size = 0x8, scoped, tag = 'scoped memory for tpu_custom_call.1']
    #allocation5 [shape = 'u8[8192]{0}', space=vmem, size = 0x2000, scoped, tag = 'output window, operand 0']
    %6 = vsyncpa [#allocation3], 0
    %s7 = scalar_lea.sflag [#allocation3], 1
    %8 = vsyncpa %s7, 0
    %9 = vsyncpa [#allocation4], 0
    %s10 = scalar_lea.sflag [#allocation4], 1
    %11 = vsyncpa %s10, 0
    loop: start=0, step=1, limit=4
    $region2: #{tpu_custom_call.1} parent=1 // loop_pre_header
      _
    $region3: #{tpu_custom_call.1} parent=1 // loop_header
      %s13 = sphi 0, %s17
      %p14 = scmp.ge.s32.totalorder %s13, 4
      %s23 = sphi 0, %s25
      %s26 = sphi 0, %s23
      %s27 = sphi 0, %s26
      %s43 = sphi 0, %s27
      %s49 = sphi 0, %s51
      %s52 = sphi 0, %s49
      %s53 = sphi 0, %s52
      %s69 = sphi 0, %s53
    $region4: #{tpu_custom_call.1} parent=1 // loop_header_branch
      %16 = sbr.rel (%p14) target = $region8
    $region5: #{tpu_custom_call.1} parent=1 // loop_body
      %s18 = ssub.s32 %s13, 1
      %s19 = ssub.s32 %s13, 2
      %s20 = sadd.s32 %s13, 1
      %s21 = ssub.s32 %s13, %s20
      %p22 = scmp.eq.s32.totalorder %s21, 0
      %s24 = sadd.s32 %s23, 1
      %s25 = scalar_select %p22, %s23, %s24
      %p28 = pneg %p22
      %p29 = scmp.eq.s32.totalorder %s13, 1
      %p30 = por %p28, %p29
      %p31 = scmp.ne.s32.totalorder %s23, %s26
      %p32 = scmp.eq.s32.totalorder %s13, 0
      %p33 = por %p31, %p32
      %p34 = scmp.ne.s32.totalorder %s23, %s26
      %p35 = scmp.eq.s32.totalorder %s18, 1
      %p36 = por %p34, %p35
      %p37 = scmp.ne.s32.totalorder %s26, %s27
      %p38 = scmp.eq.s32.totalorder %s18, 0
      %p39 = por %p37, %p38
      %p40 = scmp.ne.s32.totalorder %s26, %s27
      %p41 = scmp.eq.s32.totalorder %s19, 1
      %p42 = por %p40, %p41
      %p44 = scmp.ne.s32.totalorder %s27, %s43
      %p45 = scmp.eq.s32.totalorder %s19, 0
      %p46 = por %p44, %p45
      %s47 = ssub.s32 %s13, %s20
      %p48 = scmp.eq.s32.totalorder %s47, 0
      %s50 = sadd.s32 %s49, 1
      %s51 = scalar_select %p48, %s49, %s50
      %p54 = pneg %p48
      %p55 = scmp.eq.s32.totalorder %s13, 1
      %p56 = por %p54, %p55
      %p57 = scmp.ne.s32.totalorder %s49, %s52
      %p58 = scmp.eq.s32.totalorder %s13, 0
      %p59 = por %p57, %p58
      %p60 = scmp.ne.s32.totalorder %s49, %s52
      %p61 = scmp.eq.s32.totalorder %s18, 1
      %p62 = por %p60, %p61
      %p63 = scmp.ne.s32.totalorder %s52, %s53
      %p64 = scmp.eq.s32.totalorder %s18, 0
      %p65 = por %p63, %p64
      %p66 = scmp.ne.s32.totalorder %s52, %s53
      %p67 = scmp.eq.s32.totalorder %s19, 1
      %p68 = por %p66, %p67
      %p70 = scmp.ne.s32.totalorder %s53, %s69
      %p71 = scmp.eq.s32.totalorder %s19, 0
      %p72 = por %p70, %p71
      %p73 = scmp.le.s32.totalorder 1, %s13
      %p74 = scmp.lt.s32.totalorder %s13, 3
      %p75 = pnand %p73, %p74
      %p76 = pneg %p75
      // Predicated region
      $region9: #{tpu_custom_call.1} parent=5 // pred_check
        _
      $region10: #{tpu_custom_call.1} parent=5 // pred_check_branch
        %78 = sbr.rel (%p75) target = $region12
      $region11: #{tpu_custom_call.1} parent=5 // pred_region
        %s79 = ssub.s32 %s13, 1
      $region12: #{tpu_custom_call.1} parent=5 // pred_fallthru
        _
      %p80 = scmp.lt.s32.totalorder %s13, 2
      // Predicated region
      $region13: #{tpu_custom_call.1} parent=5 // pred_check
        %p81 = pneg %p80
      $region14: #{tpu_custom_call.1} parent=5 // pred_check_branch
        %83 = sbr.rel (%p81) target = $region16
      $region15: #{tpu_custom_call.1} parent=5 // pred_region
        // Predicated region
        $region17: #{tpu_custom_call.1} parent=15 // pred_check
          %p84 = pneg %p33
        $region18: #{tpu_custom_call.1} parent=15 // pred_check_branch
          %86 = sbr.rel (%p84) target = $region20
        $region19: #{tpu_custom_call.1} parent=15 // pred_region
          %s87 = sand.u32 %s23, 1
          %s88 = scalar_lea.sflag [#allocation3], %s87
          %s89 = sand.u32 %s23, 1
          %s90 = smul.addr %s89, 8
          %s91 = scalar_lea.vmem [#allocation2], %s90
          %s93 = ssub.s32 128, 128
          %94 = vsyncadd %s88, %s93
          %s95 = smul.addr %s13, 128
          %s96 = scalar_lea.hbm %s0, %s95
          %s98 = sshll.u32 %s91, 4
          %s99 = int_to_ptr.vmem [resolvable:$true] %s98
          %101 = dma.hbm_to_vmem [thread:$0]  %s96, 128, %s99, %s88
        $region20: #{tpu_custom_call.1} parent=15 // pred_fallthru
          _
      $region16: #{tpu_custom_call.1} parent=5 // pred_fallthru
        _
      %p102 = scmp.le.s32.totalorder 1, %s13
      %p103 = scmp.lt.s32.totalorder %s13, 3
      %p104 = pnand %p102, %p103
      %p105 = pneg %p104
      // Predicated region
      $region21: #{tpu_custom_call.1} parent=5 // pred_check
        _
      $region22: #{tpu_custom_call.1} parent=5 // pred_check_branch
        %107 = sbr.rel (%p104) target = $region24
      $region23: #{tpu_custom_call.1} parent=5 // pred_region
        %s108 = ssub.s32 %s13, 1
        %s109 = sand.u32 %s26, 1
        %s110 = scalar_lea.sflag [#allocation3], %s109
        %s111 = sand.u32 %s26, 1
        %s112 = smul.addr %s111, 8
        %s113 = scalar_lea.vmem [#allocation2], %s112
        // Predicated region
        $region25: #{tpu_custom_call.1} parent=23 // pred_check
          %p114 = pneg %p39
        $region26: #{tpu_custom_call.1} parent=23 // pred_check_branch
          %116 = sbr.rel (%p114) target = $region28
        $region27: #{tpu_custom_call.1} parent=23 // pred_region
          %117 = dma.done %s110, 128
        $region28: #{tpu_custom_call.1} parent=23 // pred_fallthru
          _
        %s118 = sand.u32 %s26, 1
        %s119 = scalar_lea.sflag [#allocation3], %s118
        %s120 = sand.u32 %s26, 1
        %s121 = smul.addr %s120, 8
        %s122 = scalar_lea.vmem [#allocation2], %s121
        %p123 = pneg %p39
        %p124 = pneg %p36
        %p125 = pneg %p65
        %p126 = pneg %p62
        %s127 = sand.u32 %s52, 1
        %s128 = scalar_lea.sflag [#allocation4], %s127
        %s129 = sand.u32 %s52, 1
        %s130 = smul.addr %s129, 8
        %s131 = scalar_lea.vmem [#allocation5], %s130
        %v132 = vld [vmem:[%s113] sm:$0xff]
        %v133 = vmax.f32 %v132, -1.0
        %v134 = vmin.f32 %v133, 1.0
        %135 = vst [vmem:[%s131] sm:$0xff] %v134
        %s136 = sand.u32 %s52, 1
        %s137 = scalar_lea.sflag [#allocation4], %s136
        %s138 = sand.u32 %s52, 1
        %s139 = smul.addr %s138, 8
        %s140 = scalar_lea.vmem [#allocation5], %s139
        // Predicated region
        $region29: #{tpu_custom_call.1} parent=23 // pred_check
          %p141 = pneg %p62
        $region30: #{tpu_custom_call.1} parent=23 // pred_check_branch
          %143 = sbr.rel (%p141) target = $region32
        $region31: #{tpu_custom_call.1} parent=23 // pred_region
          %s145 = ssub.s32 128, 128
          %146 = vsyncadd %s137, %s145
          %s147 = smul.addr %s18, 128
          %s148 = scalar_lea.hbm %s1, %s147
          %s150 = sshll.u32 %s140, 4
          %s151 = int_to_ptr.vmem [resolvable:$true] %s150
          %153 = dma.vmem_to_hbm [thread:$0]  %s151, 128, %s148, %s137
        $region32: #{tpu_custom_call.1} parent=23 // pred_fallthru
          _
      $region24: #{tpu_custom_call.1} parent=5 // pred_fallthru
        _
      %p154 = scmp.le.s32.totalorder 2, %s13
      // Predicated region
      $region33: #{tpu_custom_call.1} parent=5 // pred_check
        %p155 = pneg %p154
      $region34: #{tpu_custom_call.1} parent=5 // pred_check_branch
        %157 = sbr.rel (%p155) target = $region36
      $region35: #{tpu_custom_call.1} parent=5 // pred_region
        %s158 = ssub.s32 %s13, 2
        // Predicated region
        $region37: #{tpu_custom_call.1} parent=35 // pred_check
          %p159 = pneg %p68
        $region38: #{tpu_custom_call.1} parent=35 // pred_check_branch
          %161 = sbr.rel (%p159) target = $region40
        $region39: #{tpu_custom_call.1} parent=35 // pred_region
          %s162 = sand.u32 %s53, 1
          %s163 = scalar_lea.sflag [#allocation4], %s162
          %s164 = sand.u32 %s53, 1
          %s165 = smul.addr %s164, 8
          %s166 = scalar_lea.vmem [#allocation5], %s165
          %167 = dma.done %s163, 128
        $region40: #{tpu_custom_call.1} parent=35 // pred_fallthru
          _
      $region36: #{tpu_custom_call.1} parent=5 // pred_fallthru
        _
    $region6: #{tpu_custom_call.1} parent=1 // loop_footer
      %s17 = sadd.s32 1, %s13
    $region7: #{tpu_custom_call.1} parent=1 // loop_footer_branch
      %12 = sbr.rel target = $region3
    $region8: #{tpu_custom_call.1} parent=1 // loop_exit
      _
    %168 = vsyncpa [#allocation3], 1
    %s169 = scalar_lea.sflag [#allocation3], 1
    %170 = vsyncpa %s169, 1
    %171 = vsyncpa [#allocation4], 1
    %s172 = scalar_lea.sflag [#allocation4], 1
    %173 = vsyncpa %s172, 1

</llo_original>
